<compile_context>
chip_gen: v5e
topology: v5e:2x2
jax: 0.10.0
libtpu: 0.0.40
codegen_flags: <defaults>
</compile_context>

<pallas_src>
import functools

import numpy as np
import jax
import jax.numpy as jnp
from jax.experimental import pallas as pl
from jax.experimental.pallas import tpu as pltpu

_EPS = 1e-10  # numerical-stability epsilon (matches the bundled reference)


def _sparse_adagrad_kernel(idx_ref, vc_ref,              # scalar prefetch (SMEM)
                           lr_ref,                       # SMEM (1,) f32
                           g_ref,                        # VMEM (B, D) gradient block
                           w_in_ref, m_in_ref,           # ANY/HBM (E, D) tables (aliased)
                           w_out_ref, m_out_ref,         # ANY/HBM (E, D) table outputs
                           w_buf, m_buf,                 # VMEM (2, B, D) staging (2 slots)
                           gsem, ssem,                   # gather sem, per-slot scatter sems (2,)
                           *, block_rows):
    b = pl.program_id(0)
    nb = pl.num_programs(0)
    vc = vc_ref[0]
    lr = lr_ref[0]
    base = b * block_rows
    slot = b % 2

    def nvalid_at(step):
        return jnp.clip(vc - step * block_rows, 0, block_rows)

    nvalid = nvalid_at(b)

    # Wait `count` scatter completions on slot `slot_idx`.  The wait descriptor
    # only needs the transfer shape + semaphore, so constant row refs are used
    # (no SMEM index re-reads in wait loops).
    def wait_scatters(slot_idx, count):
        @pl.loop(0, count)
        def _(_i):
            pltpu.make_async_copy(w_buf.at[0, 0], w_out_ref.at[0], ssem.at[slot_idx]).wait()
            pltpu.make_async_copy(m_buf.at[0, 0], m_out_ref.at[0], ssem.at[slot_idx]).wait()

    # ---- reclaim this slot: wait for the scatters issued two steps ago ------
    @pl.when(b >= 2)
    def _():
        wait_scatters(slot, nvalid_at(b - 2))

    # ---- gather: all valid rows' weight & moment fetches in flight at once --
    @pl.loop(0, nvalid)
    def _(i):
        r = idx_ref[base + i]
        pltpu.make_async_copy(w_in_ref.at[r], w_buf.at[slot, i], gsem).start()
        pltpu.make_async_copy(m_in_ref.at[r], m_buf.at[slot, i], gsem).start()

    @pl.loop(0, nvalid)
    def _(_i):
        pltpu.make_async_copy(w_in_ref.at[0], w_buf.at[0, 0], gsem).wait()
        pltpu.make_async_copy(m_in_ref.at[0], m_buf.at[0, 0], gsem).wait()

    # ---- vectorized Adagrad update on the whole (B, D) staging slot (f32) ---
    # Skipped entirely for fully-invalid tail blocks.  Rows i >= nvalid hold
    # stale data but are never scattered back, so no masking is needed.
    @pl.when(nvalid > 0)
    def _():
        g = g_ref[...].astype(jnp.float32)               # (B, D)
        w = w_buf[slot].astype(jnp.float32)              # (B, D)
        m = m_buf[slot].astype(jnp.float32)              # (B, D)
        m_new = m + g * g
        w_new = w - lr * g * jax.lax.rsqrt(m_new + _EPS)
        w_buf[slot] = w_new.astype(w_buf.dtype)
        m_buf[slot] = m_new.astype(m_buf.dtype)

    # ---- scatter valid rows back; waits are deferred to step b+2 (reclaim) --
    @pl.loop(0, nvalid)
    def _(i):
        r = idx_ref[base + i]
        pltpu.make_async_copy(w_buf.at[slot, i], w_out_ref.at[r], ssem.at[slot]).start()
        pltpu.make_async_copy(m_buf.at[slot, i], m_out_ref.at[r], ssem.at[slot]).start()

    # ---- drain on the final grid step so no DMA outlives the kernel ---------
    @pl.when(b == nb - 1)
    def _():
        wait_scatters(slot, nvalid)                      # this step's scatters
        @pl.when(b >= 1)
        def _():
            wait_scatters(1 - slot, nvalid_at(b - 1))    # previous step's scatters


def habana_sparse_adagrad(gradients, weights, moments, indices,
                          learning_rate, valid_count, *, block_rows=256):
    """Returns (updated_weights, updated_moments)."""
    N, D = gradients.shape
    E, D2 = weights.shape
    assert D == D2 and moments.shape == weights.shape
    assert weights.dtype == moments.dtype

    block_rows = max(8, (block_rows // 8) * 8)           # sublane-aligned gradient blocks
    nb = (N + block_rows - 1) // block_rows
    n_pad = nb * block_rows

    indices = jnp.asarray(indices, jnp.int32)
    gradients = jnp.asarray(gradients)
    if n_pad != N:
        indices = jnp.pad(indices, (0, n_pad - N))
        gradients = jnp.pad(gradients, ((0, n_pad - N), (0, 0)))

    # Clamp valid_count so guarded index reads never run past the padded region.
    vc = jnp.minimum(jnp.asarray(valid_count, jnp.int32), N).reshape((1,))
    lr = jnp.asarray(learning_rate, jnp.float32).reshape((1,))

    kernel = functools.partial(_sparse_adagrad_kernel, block_rows=block_rows)

    grid_spec = pltpu.PrefetchScalarGridSpec(
        num_scalar_prefetch=2,          # indices, valid_count
        grid=(nb,),
        in_specs=[
            pl.BlockSpec(memory_space=pltpu.SMEM),                     # learning_rate
            pl.BlockSpec((block_rows, D), lambda b, idx, vc: (b, 0)),  # gradients block
            pl.BlockSpec(memory_space=pl.ANY),                         # weights (HBM)
            pl.BlockSpec(memory_space=pl.ANY),                         # moments (HBM)
        ],
        out_specs=[
            pl.BlockSpec(memory_space=pl.ANY),                         # weights out
            pl.BlockSpec(memory_space=pl.ANY),                         # moments out
        ],
        scratch_shapes=[
            pltpu.VMEM((2, block_rows, D), weights.dtype),             # weight staging (2 slots)
            pltpu.VMEM((2, block_rows, D), moments.dtype),             # moment staging (2 slots)
            pltpu.SemaphoreType.DMA,                                   # shared gather sem
            pltpu.SemaphoreType.DMA((2,)),                             # per-slot scatter sems
        ],
    )

    w_out, m_out = pl.pallas_call(
        kernel,
        out_shape=(jax.ShapeDtypeStruct((E, D), weights.dtype),
                   jax.ShapeDtypeStruct((E, D), moments.dtype)),
        grid_spec=grid_spec,
        # call args: (indices, vc, lr, gradients, weights, moments).
        # weights -> output 0, moments -> output 1 so untouched rows keep
        # their original values without any full-table copy.
        input_output_aliases={4: 0, 5: 1},
        compiler_params=pltpu.CompilerParams(
            # "arbitrary": the cross-step deferred scatter waits create
            # dependencies between consecutive grid steps.
            dimension_semantics=("arbitrary",),
            has_side_effects=True,
        ),
    )(indices, vc, lr, gradients, weights, moments)

    return w_out, m_out


def _reference(g, w, m, idx, lr, vc):
    g = np.asarray(g, np.float32)
    w = np.asarray(w, np.float32).copy()
    m = np.asarray(m, np.float32).copy()
    idx = np.asarray(idx)
    for i in range(int(vc)):
        r = int(idx[i])
        m[r] = m[r] + g[i] * g[i]
        w[r] = w[r] - float(lr) * g[i] / np.sqrt(m[r] + _EPS)
    return w, m


if __name__ == "__main__":
    E, D, N = 64, 128, 20         # embedding rows, feature dim (lane-dense), num sparse grads
    valid_count = 18              # exercises the skipped invalid tail
    learning_rate = 0.05

    key = jax.random.PRNGKey(0)
    k1, k2, k3, k4 = jax.random.split(key, 4)
    gradients = jax.random.normal(k1, (N, D), dtype=jnp.float32)
    weights = jax.random.normal(k2, (E, D), dtype=jnp.float32)
    moments = jax.random.uniform(k3, (E, D), dtype=jnp.float32) + 0.1
    indices = jax.random.permutation(k4, E)[:N].astype(jnp.int32)  # unique rows

    w_ref_np, m_ref_np = _reference(gradients, weights, moments, indices,
                                    learning_rate, valid_count)

    # Small block size: multi-step grid, exercises deferred scatters, slot
    # reclaim, partial-valid block and final-step draining.
    w1, m1 = habana_sparse_adagrad(gradients, weights, moments, indices,
                                   learning_rate, valid_count, block_rows=8)
    # Default (large) block size: single-step path.
    w2, m2 = habana_sparse_adagrad(gradients, weights, moments, indices,
                                   learning_rate, valid_count)
    jax.block_until_ready((w1, m1, w2, m2))

    np.testing.assert_allclose(np.asarray(w1), w_ref_np, rtol=1e-4, atol=1e-5)
    np.testing.assert_allclose(np.asarray(m1), m_ref_np, rtol=1e-5, atol=1e-6)
    np.testing.assert_allclose(np.asarray(w2), w_ref_np, rtol=1e-4, atol=1e-5)
    np.testing.assert_allclose(np.asarray(m2), m_ref_np, rtol=1e-5, atol=1e-6)

    print("KERNEL_OK")
</pallas_src>

<mosaic_0001>
module attributes {stable_mosaic.version = 11 : i64} {
  func.func @_sparse_adagrad_kernel(%arg0: i32, %arg1: memref<24xi32, #tpu.memory_space<smem>>, %arg2: memref<1xi32, #tpu.memory_space<smem>>, %arg3: memref<1xf32, #tpu.memory_space<smem>>, %arg4: memref<8x128xf32, #tpu.memory_space<vmem>>, %arg5: memref<64x128xf32, #tpu.memory_space<any>>, %arg6: memref<64x128xf32, #tpu.memory_space<any>>, %arg7: memref<64x128xf32, #tpu.memory_space<any>>, %arg8: memref<64x128xf32, #tpu.memory_space<any>>, %arg9: memref<2x8x128xf32, #tpu.memory_space<vmem>>, %arg10: memref<2x8x128xf32, #tpu.memory_space<vmem>>, %arg11: memref<!tpu.dma_semaphore, #tpu.memory_space<semaphore_mem>>, %arg12: memref<2x!tpu.dma_semaphore, #tpu.memory_space<semaphore_mem>>) attributes {dimension_semantics = [#tpu.dimension_semantics<arbitrary>], iteration_bounds = array<i64: 3>, scalar_prefetch = 2 : i64, scratch_operands = 4 : i64, tpu.core_type = #tpu.core_type<tc>, window_params = [{transform_indices = @transform_0, window_bounds = array<i64: 1>}, {transform_indices = @transform_1, window_bounds = array<i64: 8, 128>}, {}, {}, {}, {}]} {
    %c0 = arith.constant 0 : index
    %0 = memref.load %arg2[%c0] : memref<1xi32, #tpu.memory_space<smem>>
    %c0_0 = arith.constant 0 : index
    %1 = memref.load %arg3[%c0_0] : memref<1xf32, #tpu.memory_space<smem>>
    %c8_i32 = arith.constant 8 : i32
    %2 = arith.muli %arg0, %c8_i32 : i32
    %c2_i32 = arith.constant 2 : i32
    %c0_i32 = arith.constant 0 : i32
    %3 = arith.cmpi eq, %c2_i32, %c0_i32 : i32
    %c1_i32 = arith.constant 1 : i32
    %4 = arith.select %3, %c1_i32, %c2_i32 : i32
    %5 = arith.remsi %arg0, %4 : i32
    %c0_i32_1 = arith.constant 0 : i32
    %6 = arith.cmpi ne, %5, %c0_i32_1 : i32
    %c0_i32_2 = arith.constant 0 : i32
    %7 = arith.cmpi slt, %5, %c0_i32_2 : i32
    %c0_i32_3 = arith.constant 0 : i32
    %8 = arith.cmpi slt, %4, %c0_i32_3 : i32
    %9 = arith.xori %7, %8 : i1
    %10 = arith.andi %9, %6 : i1
    %11 = arith.addi %5, %4 : i32
    %12 = arith.select %10, %11, %5 : i32
    %c8_i32_4 = arith.constant 8 : i32
    %13 = arith.muli %arg0, %c8_i32_4 : i32
    %14 = arith.subi %0, %13 : i32
    %c0_i32_5 = arith.constant 0 : i32
    %c8_i32_6 = arith.constant 8 : i32
    %15 = arith.maxsi %c0_i32_5, %14 : i32
    %16 = arith.minsi %c8_i32_6, %15 : i32
    %c2_i32_7 = arith.constant 2 : i32
    %17 = arith.cmpi sge, %arg0, %c2_i32_7 : i32
    %18 = arith.extui %17 : i1 to i32
    %c0_i32_8 = arith.constant 0 : i32
    %19 = arith.cmpi ne, %18, %c0_i32_8 : i32
    scf.if %19 {
      %c2_i32_37 = arith.constant 2 : i32
      %44 = arith.subi %arg0, %c2_i32_37 : i32
      %c8_i32_38 = arith.constant 8 : i32
      %45 = arith.muli %44, %c8_i32_38 : i32
      %46 = arith.subi %0, %45 : i32
      %c0_i32_39 = arith.constant 0 : i32
      %c8_i32_40 = arith.constant 8 : i32
      %47 = arith.maxsi %c0_i32_39, %46 : i32
      %48 = arith.minsi %c8_i32_40, %47 : i32
      %c0_i32_41 = arith.constant 0 : i32
      %49 = arith.subi %48, %c0_i32_41 : i32
      %c1_i32_42 = arith.constant 1 : i32
      %c1_i32_43 = arith.constant 1 : i32
      %50 = arith.subi %c1_i32_42, %c1_i32_43 : i32
      %51 = arith.addi %49, %50 : i32
      %c1_i32_44 = arith.constant 1 : i32
      %52 = arith.divsi %51, %c1_i32_44 : i32
      %c1_i32_45 = arith.constant 1 : i32
      %c0_i32_46 = arith.constant 0 : i32
      %c0_i32_47 = arith.constant 0 : i32
      %53 = arith.subi %52, %c0_i32_47 : i32
      %54 = arith.addi %c0_i32_47, %53 : i32
      %c1_i32_48 = arith.constant 1 : i32
      scf.for %arg13 = %c0_i32_47 to %54 step %c1_i32_48  : i32 {
        %55 = arith.muli %arg13, %c1_i32_45 : i32
        %56 = arith.addi %c0_i32_46, %55 : i32
        %c0_i32_49 = arith.constant 0 : i32
        %c0_i32_50 = arith.constant 0 : i32
        %c0_i32_51 = arith.constant 0 : i32
        %c0_i32_52 = arith.constant 0 : i32
        %57 = tpu.memref_slice %arg9[%c0_i32_49, %c0_i32_50, %c0_i32_52] : memref<2x8x128xf32, #tpu.memory_space<vmem>> -> memref<1x1x128xf32, #tpu.memory_space<vmem>>
        %58 = tpu.memref_squeeze %57 : memref<1x1x128xf32, #tpu.memory_space<vmem>> -> memref<128xf32, #tpu.memory_space<vmem>>
        %c0_i32_53 = arith.constant 0 : i32
        %59 = tpu.memref_slice %arg7[%c0_i32_51, %c0_i32_53] : memref<64x128xf32, #tpu.memory_space<any>> -> memref<1x128xf32, #tpu.memory_space<any>>
        %60 = tpu.memref_squeeze %59 : memref<1x128xf32, #tpu.memory_space<any>> -> memref<128xf32, #tpu.memory_space<any>>
        %61 = tpu.memref_slice %arg12[%12] : memref<2x!tpu.dma_semaphore, #tpu.memory_space<semaphore_mem>> -> memref<1x!tpu.dma_semaphore, #tpu.memory_space<semaphore_mem>>
        %62 = tpu.memref_squeeze %61 : memref<1x!tpu.dma_semaphore, #tpu.memory_space<semaphore_mem>> -> memref<!tpu.dma_semaphore, #tpu.memory_space<semaphore_mem>>
        tpu.wait_dma2 semaphore(%62 : memref<!tpu.dma_semaphore, #tpu.memory_space<semaphore_mem>>) src(%58 : memref<128xf32, #tpu.memory_space<vmem>>) dst(%60 : memref<128xf32, #tpu.memory_space<any>>)
        %c0_i32_54 = arith.constant 0 : i32
        %c0_i32_55 = arith.constant 0 : i32
        %c0_i32_56 = arith.constant 0 : i32
        %c0_i32_57 = arith.constant 0 : i32
        %63 = tpu.memref_slice %arg10[%c0_i32_54, %c0_i32_55, %c0_i32_57] : memref<2x8x128xf32, #tpu.memory_space<vmem>> -> memref<1x1x128xf32, #tpu.memory_space<vmem>>
        %64 = tpu.memref_squeeze %63 : memref<1x1x128xf32, #tpu.memory_space<vmem>> -> memref<128xf32, #tpu.memory_space<vmem>>
        %c0_i32_58 = arith.constant 0 : i32
        %65 = tpu.memref_slice %arg8[%c0_i32_56, %c0_i32_58] : memref<64x128xf32, #tpu.memory_space<any>> -> memref<1x128xf32, #tpu.memory_space<any>>
        %66 = tpu.memref_squeeze %65 : memref<1x128xf32, #tpu.memory_space<any>> -> memref<128xf32, #tpu.memory_space<any>>
        %67 = tpu.memref_slice %arg12[%12] : memref<2x!tpu.dma_semaphore, #tpu.memory_space<semaphore_mem>> -> memref<1x!tpu.dma_semaphore, #tpu.memory_space<semaphore_mem>>
        %68 = tpu.memref_squeeze %67 : memref<1x!tpu.dma_semaphore, #tpu.memory_space<semaphore_mem>> -> memref<!tpu.dma_semaphore, #tpu.memory_space<semaphore_mem>>
        tpu.wait_dma2 semaphore(%68 : memref<!tpu.dma_semaphore, #tpu.memory_space<semaphore_mem>>) src(%64 : memref<128xf32, #tpu.memory_space<vmem>>) dst(%66 : memref<128xf32, #tpu.memory_space<any>>)
      }
    } else {
    }
    %c0_i32_9 = arith.constant 0 : i32
    %20 = arith.subi %16, %c0_i32_9 : i32
    %c1_i32_10 = arith.constant 1 : i32
    %c1_i32_11 = arith.constant 1 : i32
    %21 = arith.subi %c1_i32_10, %c1_i32_11 : i32
    %22 = arith.addi %20, %21 : i32
    %c1_i32_12 = arith.constant 1 : i32
    %23 = arith.divsi %22, %c1_i32_12 : i32
    %c1_i32_13 = arith.constant 1 : i32
    %c0_i32_14 = arith.constant 0 : i32
    %c0_i32_15 = arith.constant 0 : i32
    %24 = arith.subi %23, %c0_i32_15 : i32
    %25 = arith.addi %c0_i32_15, %24 : i32
    %c1_i32_16 = arith.constant 1 : i32
    scf.for %arg13 = %c0_i32_15 to %25 step %c1_i32_16  : i32 {
      %44 = arith.muli %arg13, %c1_i32_13 : i32
      %45 = arith.addi %c0_i32_14, %44 : i32
      %46 = arith.addi %2, %45 : i32
      %47 = arith.index_cast %46 : i32 to index
      %48 = memref.load %arg1[%47] : memref<24xi32, #tpu.memory_space<smem>>
      %c0_i32_37 = arith.constant 0 : i32
      %49 = tpu.memref_slice %arg5[%48, %c0_i32_37] : memref<64x128xf32, #tpu.memory_space<any>> -> memref<1x128xf32, #tpu.memory_space<any>>
      %50 = tpu.memref_squeeze %49 : memref<1x128xf32, #tpu.memory_space<any>> -> memref<128xf32, #tpu.memory_space<any>>
      %c0_i32_38 = arith.constant 0 : i32
      %51 = tpu.memref_slice %arg9[%12, %45, %c0_i32_38] : memref<2x8x128xf32, #tpu.memory_space<vmem>> -> memref<1x1x128xf32, #tpu.memory_space<vmem>>
      %52 = tpu.memref_squeeze %51 : memref<1x1x128xf32, #tpu.memory_space<vmem>> -> memref<128xf32, #tpu.memory_space<vmem>>
      tpu.enqueue_dma source(%50 : memref<128xf32, #tpu.memory_space<any>>) target(%52 : memref<128xf32, #tpu.memory_space<vmem>>) target_semaphore(%arg11 : memref<!tpu.dma_semaphore, #tpu.memory_space<semaphore_mem>>)
      %c0_i32_39 = arith.constant 0 : i32
      %53 = tpu.memref_slice %arg6[%48, %c0_i32_39] : memref<64x128xf32, #tpu.memory_space<any>> -> memref<1x128xf32, #tpu.memory_space<any>>
      %54 = tpu.memref_squeeze %53 : memref<1x128xf32, #tpu.memory_space<any>> -> memref<128xf32, #tpu.memory_space<any>>
      %c0_i32_40 = arith.constant 0 : i32
      %55 = tpu.memref_slice %arg10[%12, %45, %c0_i32_40] : memref<2x8x128xf32, #tpu.memory_space<vmem>> -> memref<1x1x128xf32, #tpu.memory_space<vmem>>
      %56 = tpu.memref_squeeze %55 : memref<1x1x128xf32, #tpu.memory_space<vmem>> -> memref<128xf32, #tpu.memory_space<vmem>>
      tpu.enqueue_dma source(%54 : memref<128xf32, #tpu.memory_space<any>>) target(%56 : memref<128xf32, #tpu.memory_space<vmem>>) target_semaphore(%arg11 : memref<!tpu.dma_semaphore, #tpu.memory_space<semaphore_mem>>)
    }
    %c0_i32_17 = arith.constant 0 : i32
    %26 = arith.subi %16, %c0_i32_17 : i32
    %c1_i32_18 = arith.constant 1 : i32
    %c1_i32_19 = arith.constant 1 : i32
    %27 = arith.subi %c1_i32_18, %c1_i32_19 : i32
    %28 = arith.addi %26, %27 : i32
    %c1_i32_20 = arith.constant 1 : i32
    %29 = arith.divsi %28, %c1_i32_20 : i32
    %c1_i32_21 = arith.constant 1 : i32
    %c0_i32_22 = arith.constant 0 : i32
    %c0_i32_23 = arith.constant 0 : i32
    %30 = arith.subi %29, %c0_i32_23 : i32
    %31 = arith.addi %c0_i32_23, %30 : i32
    %c1_i32_24 = arith.constant 1 : i32
    scf.for %arg13 = %c0_i32_23 to %31 step %c1_i32_24  : i32 {
      %44 = arith.muli %arg13, %c1_i32_21 : i32
      %45 = arith.addi %c0_i32_22, %44 : i32
      %c0_i32_37 = arith.constant 0 : i32
      %c0_i32_38 = arith.constant 0 : i32
      %c0_i32_39 = arith.constant 0 : i32
      %c0_i32_40 = arith.constant 0 : i32
      %46 = tpu.memref_slice %arg5[%c0_i32_37, %c0_i32_40] : memref<64x128xf32, #tpu.memory_space<any>> -> memref<1x128xf32, #tpu.memory_space<any>>
      %47 = tpu.memref_squeeze %46 : memref<1x128xf32, #tpu.memory_space<any>> -> memref<128xf32, #tpu.memory_space<any>>
      %c0_i32_41 = arith.constant 0 : i32
      %48 = tpu.memref_slice %arg9[%c0_i32_38, %c0_i32_39, %c0_i32_41] : memref<2x8x128xf32, #tpu.memory_space<vmem>> -> memref<1x1x128xf32, #tpu.memory_space<vmem>>
      %49 = tpu.memref_squeeze %48 : memref<1x1x128xf32, #tpu.memory_space<vmem>> -> memref<128xf32, #tpu.memory_space<vmem>>
      tpu.wait_dma2 semaphore(%arg11 : memref<!tpu.dma_semaphore, #tpu.memory_space<semaphore_mem>>) src(%47 : memref<128xf32, #tpu.memory_space<any>>) dst(%49 : memref<128xf32, #tpu.memory_space<vmem>>)
      %c0_i32_42 = arith.constant 0 : i32
      %c0_i32_43 = arith.constant 0 : i32
      %c0_i32_44 = arith.constant 0 : i32
      %c0_i32_45 = arith.constant 0 : i32
      %50 = tpu.memref_slice %arg6[%c0_i32_42, %c0_i32_45] : memref<64x128xf32, #tpu.memory_space<any>> -> memref<1x128xf32, #tpu.memory_space<any>>
      %51 = tpu.memref_squeeze %50 : memref<1x128xf32, #tpu.memory_space<any>> -> memref<128xf32, #tpu.memory_space<any>>
      %c0_i32_46 = arith.constant 0 : i32
      %52 = tpu.memref_slice %arg10[%c0_i32_43, %c0_i32_44, %c0_i32_46] : memref<2x8x128xf32, #tpu.memory_space<vmem>> -> memref<1x1x128xf32, #tpu.memory_space<vmem>>
      %53 = tpu.memref_squeeze %52 : memref<1x1x128xf32, #tpu.memory_space<vmem>> -> memref<128xf32, #tpu.memory_space<vmem>>
      tpu.wait_dma2 semaphore(%arg11 : memref<!tpu.dma_semaphore, #tpu.memory_space<semaphore_mem>>) src(%51 : memref<128xf32, #tpu.memory_space<any>>) dst(%53 : memref<128xf32, #tpu.memory_space<vmem>>)
    }
    %c0_i32_25 = arith.constant 0 : i32
    %32 = arith.cmpi sgt, %16, %c0_i32_25 : i32
    %33 = arith.extui %32 : i1 to i32
    %c0_i32_26 = arith.constant 0 : i32
    %34 = arith.cmpi ne, %33, %c0_i32_26 : i32
    scf.if %34 {
      %c0_37 = arith.constant 0 : index
      %c0_38 = arith.constant 0 : index
      %44 = vector.load %arg4[%c0_37, %c0_38] : memref<8x128xf32, #tpu.memory_space<vmem>>, vector<8x128xf32>
      %45 = arith.index_cast %12 : i32 to index
      %c0_39 = arith.constant 0 : index
      %c0_40 = arith.constant 0 : index
      %46 = vector.load %arg9[%45, %c0_39, %c0_40] : memref<2x8x128xf32, #tpu.memory_space<vmem>>, vector<1x8x128xf32>
      %47 = vector.shape_cast %46 : vector<1x8x128xf32> to vector<8x128xf32>
      %48 = arith.index_cast %12 : i32 to index
      %c0_41 = arith.constant 0 : index
      %c0_42 = arith.constant 0 : index
      %49 = vector.load %arg10[%48, %c0_41, %c0_42] : memref<2x8x128xf32, #tpu.memory_space<vmem>>, vector<1x8x128xf32>
      %50 = vector.shape_cast %49 : vector<1x8x128xf32> to vector<8x128xf32>
      %51 = arith.mulf %44, %44 : vector<8x128xf32>
      %52 = arith.addf %50, %51 : vector<8x128xf32>
      %53 = vector.broadcast %1 : f32 to vector<8x128xf32>
      %54 = arith.mulf %53, %44 : vector<8x128xf32>
      %cst = arith.constant 1.000000e-10 : f32
      %55 = vector.broadcast %cst : f32 to vector<8x128xf32>
      %56 = arith.addf %52, %55 : vector<8x128xf32>
      %57 = math.rsqrt %56 : vector<8x128xf32>
      %58 = arith.mulf %54, %57 : vector<8x128xf32>
      %59 = arith.subf %47, %58 : vector<8x128xf32>
      %60 = arith.index_cast %12 : i32 to index
      %c0_43 = arith.constant 0 : index
      %c0_44 = arith.constant 0 : index
      %61 = vector.load %arg9[%60, %c0_43, %c0_44] : memref<2x8x128xf32, #tpu.memory_space<vmem>>, vector<1x8x128xf32>
      %62 = vector.shape_cast %61 : vector<1x8x128xf32> to vector<8x128xf32>
      %63 = vector.shape_cast %59 : vector<8x128xf32> to vector<1x8x128xf32>
      tpu.vector_store %arg9[%60, %c0_43, %c0_44], %63 {strides = array<i32>} : memref<2x8x128xf32, #tpu.memory_space<vmem>>, vector<1x8x128xf32>,
      %64 = arith.index_cast %12 : i32 to index
      %c0_45 = arith.constant 0 : index
      %c0_46 = arith.constant 0 : index
      %65 = vector.load %arg10[%64, %c0_45, %c0_46] : memref<2x8x128xf32, #tpu.memory_space<vmem>>, vector<1x8x128xf32>
      %66 = vector.shape_cast %65 : vector<1x8x128xf32> to vector<8x128xf32>
      %67 = vector.shape_cast %52 : vector<8x128xf32> to vector<1x8x128xf32>
      tpu.vector_store %arg10[%64, %c0_45, %c0_46], %67 {strides = array<i32>} : memref<2x8x128xf32, #tpu.memory_space<vmem>>, vector<1x8x128xf32>,
    } else {
    }
    %c0_i32_27 = arith.constant 0 : i32
    %35 = arith.subi %16, %c0_i32_27 : i32
    %c1_i32_28 = arith.constant 1 : i32
    %c1_i32_29 = arith.constant 1 : i32
    %36 = arith.subi %c1_i32_28, %c1_i32_29 : i32
    %37 = arith.addi %35, %36 : i32
    %c1_i32_30 = arith.constant 1 : i32
    %38 = arith.divsi %37, %c1_i32_30 : i32
    %c1_i32_31 = arith.constant 1 : i32
    %c0_i32_32 = arith.constant 0 : i32
    %c0_i32_33 = arith.constant 0 : i32
    %39 = arith.subi %38, %c0_i32_33 : i32
    %40 = arith.addi %c0_i32_33, %39 : i32
    %c1_i32_34 = arith.constant 1 : i32
    scf.for %arg13 = %c0_i32_33 to %40 step %c1_i32_34  : i32 {
      %44 = arith.muli %arg13, %c1_i32_31 : i32
      %45 = arith.addi %c0_i32_32, %44 : i32
      %46 = arith.addi %2, %45 : i32
      %47 = arith.index_cast %46 : i32 to index
      %48 = memref.load %arg1[%47] : memref<24xi32, #tpu.memory_space<smem>>
      %c0_i32_37 = arith.constant 0 : i32
      %49 = tpu.memref_slice %arg9[%12, %45, %c0_i32_37] : memref<2x8x128xf32, #tpu.memory_space<vmem>> -> memref<1x1x128xf32, #tpu.memory_space<vmem>>
      %50 = tpu.memref_squeeze %49 : memref<1x1x128xf32, #tpu.memory_space<vmem>> -> memref<128xf32, #tpu.memory_space<vmem>>
      %c0_i32_38 = arith.constant 0 : i32
      %51 = tpu.memref_slice %arg7[%48, %c0_i32_38] : memref<64x128xf32, #tpu.memory_space<any>> -> memref<1x128xf32, #tpu.memory_space<any>>
      %52 = tpu.memref_squeeze %51 : memref<1x128xf32, #tpu.memory_space<any>> -> memref<128xf32, #tpu.memory_space<any>>
      %53 = tpu.memref_slice %arg12[%12] : memref<2x!tpu.dma_semaphore, #tpu.memory_space<semaphore_mem>> -> memref<1x!tpu.dma_semaphore, #tpu.memory_space<semaphore_mem>>
      %54 = tpu.memref_squeeze %53 : memref<1x!tpu.dma_semaphore, #tpu.memory_space<semaphore_mem>> -> memref<!tpu.dma_semaphore, #tpu.memory_space<semaphore_mem>>
      tpu.enqueue_dma source(%50 : memref<128xf32, #tpu.memory_space<vmem>>) target(%52 : memref<128xf32, #tpu.memory_space<any>>) target_semaphore(%54 : memref<!tpu.dma_semaphore, #tpu.memory_space<semaphore_mem>>)
      %c0_i32_39 = arith.constant 0 : i32
      %55 = tpu.memref_slice %arg10[%12, %45, %c0_i32_39] : memref<2x8x128xf32, #tpu.memory_space<vmem>> -> memref<1x1x128xf32, #tpu.memory_space<vmem>>
      %56 = tpu.memref_squeeze %55 : memref<1x1x128xf32, #tpu.memory_space<vmem>> -> memref<128xf32, #tpu.memory_space<vmem>>
      %c0_i32_40 = arith.constant 0 : i32
      %57 = tpu.memref_slice %arg8[%48, %c0_i32_40] : memref<64x128xf32, #tpu.memory_space<any>> -> memref<1x128xf32, #tpu.memory_space<any>>
      %58 = tpu.memref_squeeze %57 : memref<1x128xf32, #tpu.memory_space<any>> -> memref<128xf32, #tpu.memory_space<any>>
      %59 = tpu.memref_slice %arg12[%12] : memref<2x!tpu.dma_semaphore, #tpu.memory_space<semaphore_mem>> -> memref<1x!tpu.dma_semaphore, #tpu.memory_space<semaphore_mem>>
      %60 = tpu.memref_squeeze %59 : memref<1x!tpu.dma_semaphore, #tpu.memory_space<semaphore_mem>> -> memref<!tpu.dma_semaphore, #tpu.memory_space<semaphore_mem>>
      tpu.enqueue_dma source(%56 : memref<128xf32, #tpu.memory_space<vmem>>) target(%58 : memref<128xf32, #tpu.memory_space<any>>) target_semaphore(%60 : memref<!tpu.dma_semaphore, #tpu.memory_space<semaphore_mem>>)
    }
    %c2_i32_35 = arith.constant 2 : i32
    %41 = arith.cmpi eq, %arg0, %c2_i32_35 : i32
    %42 = arith.extui %41 : i1 to i32
    %c0_i32_36 = arith.constant 0 : i32
    %43 = arith.cmpi ne, %42, %c0_i32_36 : i32
    scf.if %43 {
      %c0_i32_37 = arith.constant 0 : i32
      %44 = arith.subi %16, %c0_i32_37 : i32
      %c1_i32_38 = arith.constant 1 : i32
      %c1_i32_39 = arith.constant 1 : i32
      %45 = arith.subi %c1_i32_38, %c1_i32_39 : i32
      %46 = arith.addi %44, %45 : i32
      %c1_i32_40 = arith.constant 1 : i32
      %47 = arith.divsi %46, %c1_i32_40 : i32
      %c1_i32_41 = arith.constant 1 : i32
      %c0_i32_42 = arith.constant 0 : i32
      %c0_i32_43 = arith.constant 0 : i32
      %48 = arith.subi %47, %c0_i32_43 : i32
      %49 = arith.addi %c0_i32_43, %48 : i32
      %c1_i32_44 = arith.constant 1 : i32
      scf.for %arg13 = %c0_i32_43 to %49 step %c1_i32_44  : i32 {
        %53 = arith.muli %arg13, %c1_i32_41 : i32
        %54 = arith.addi %c0_i32_42, %53 : i32
        %c0_i32_47 = arith.constant 0 : i32
        %c0_i32_48 = arith.constant 0 : i32
        %c0_i32_49 = arith.constant 0 : i32
        %c0_i32_50 = arith.constant 0 : i32
        %55 = tpu.memref_slice %arg9[%c0_i32_47, %c0_i32_48, %c0_i32_50] : memref<2x8x128xf32, #tpu.memory_space<vmem>> -> memref<1x1x128xf32, #tpu.memory_space<vmem>>
        %56 = tpu.memref_squeeze %55 : memref<1x1x128xf32, #tpu.memory_space<vmem>> -> memref<128xf32, #tpu.memory_space<vmem>>
        %c0_i32_51 = arith.constant 0 : i32
        %57 = tpu.memref_slice %arg7[%c0_i32_49, %c0_i32_51] : memref<64x128xf32, #tpu.memory_space<any>> -> memref<1x128xf32, #tpu.memory_space<any>>
        %58 = tpu.memref_squeeze %57 : memref<1x128xf32, #tpu.memory_space<any>> -> memref<128xf32, #tpu.memory_space<any>>
        %59 = tpu.memref_slice %arg12[%12] : memref<2x!tpu.dma_semaphore, #tpu.memory_space<semaphore_mem>> -> memref<1x!tpu.dma_semaphore, #tpu.memory_space<semaphore_mem>>
        %60 = tpu.memref_squeeze %59 : memref<1x!tpu.dma_semaphore, #tpu.memory_space<semaphore_mem>> -> memref<!tpu.dma_semaphore, #tpu.memory_space<semaphore_mem>>
        tpu.wait_dma2 semaphore(%60 : memref<!tpu.dma_semaphore, #tpu.memory_space<semaphore_mem>>) src(%56 : memref<128xf32, #tpu.memory_space<vmem>>) dst(%58 : memref<128xf32, #tpu.memory_space<any>>)
        %c0_i32_52 = arith.constant 0 : i32
        %c0_i32_53 = arith.constant 0 : i32
        %c0_i32_54 = arith.constant 0 : i32
        %c0_i32_55 = arith.constant 0 : i32
        %61 = tpu.memref_slice %arg10[%c0_i32_52, %c0_i32_53, %c0_i32_55] : memref<2x8x128xf32, #tpu.memory_space<vmem>> -> memref<1x1x128xf32, #tpu.memory_space<vmem>>
        %62 = tpu.memref_squeeze %61 : memref<1x1x128xf32, #tpu.memory_space<vmem>> -> memref<128xf32, #tpu.memory_space<vmem>>
        %c0_i32_56 = arith.constant 0 : i32
        %63 = tpu.memref_slice %arg8[%c0_i32_54, %c0_i32_56] : memref<64x128xf32, #tpu.memory_space<any>> -> memref<1x128xf32, #tpu.memory_space<any>>
        %64 = tpu.memref_squeeze %63 : memref<1x128xf32, #tpu.memory_space<any>> -> memref<128xf32, #tpu.memory_space<any>>
        %65 = tpu.memref_slice %arg12[%12] : memref<2x!tpu.dma_semaphore, #tpu.memory_space<semaphore_mem>> -> memref<1x!tpu.dma_semaphore, #tpu.memory_space<semaphore_mem>>
        %66 = tpu.memref_squeeze %65 : memref<1x!tpu.dma_semaphore, #tpu.memory_space<semaphore_mem>> -> memref<!tpu.dma_semaphore, #tpu.memory_space<semaphore_mem>>
        tpu.wait_dma2 semaphore(%66 : memref<!tpu.dma_semaphore, #tpu.memory_space<semaphore_mem>>) src(%62 : memref<128xf32, #tpu.memory_space<vmem>>) dst(%64 : memref<128xf32, #tpu.memory_space<any>>)
      }
      %c1_i32_45 = arith.constant 1 : i32
      %50 = arith.cmpi sge, %arg0, %c1_i32_45 : i32
      %51 = arith.extui %50 : i1 to i32
      %c0_i32_46 = arith.constant 0 : i32
      %52 = arith.cmpi ne, %51, %c0_i32_46 : i32
      scf.if %52 {
        %c1_i32_47 = arith.constant 1 : i32
        %53 = arith.subi %c1_i32_47, %12 : i32
        %c1_i32_48 = arith.constant 1 : i32
        %54 = arith.subi %arg0, %c1_i32_48 : i32
        %c8_i32_49 = arith.constant 8 : i32
        %55 = arith.muli %54, %c8_i32_49 : i32
        %56 = arith.subi %0, %55 : i32
        %c0_i32_50 = arith.constant 0 : i32
        %c8_i32_51 = arith.constant 8 : i32
        %57 = arith.maxsi %c0_i32_50, %56 : i32
        %58 = arith.minsi %c8_i32_51, %57 : i32
        %c0_i32_52 = arith.constant 0 : i32
        %59 = arith.subi %58, %c0_i32_52 : i32
        %c1_i32_53 = arith.constant 1 : i32
        %c1_i32_54 = arith.constant 1 : i32
        %60 = arith.subi %c1_i32_53, %c1_i32_54 : i32
        %61 = arith.addi %59, %60 : i32
        %c1_i32_55 = arith.constant 1 : i32
        %62 = arith.divsi %61, %c1_i32_55 : i32
        %c1_i32_56 = arith.constant 1 : i32
        %c0_i32_57 = arith.constant 0 : i32
        %c0_i32_58 = arith.constant 0 : i32
        %63 = arith.subi %62, %c0_i32_58 : i32
        %64 = arith.addi %c0_i32_58, %63 : i32
        %c1_i32_59 = arith.constant 1 : i32
        scf.for %arg13 = %c0_i32_58 to %64 step %c1_i32_59  : i32 {
          %65 = arith.muli %arg13, %c1_i32_56 : i32
          %66 = arith.addi %c0_i32_57, %65 : i32
          %c0_i32_60 = arith.constant 0 : i32
          %c0_i32_61 = arith.constant 0 : i32
          %c0_i32_62 = arith.constant 0 : i32
          %c0_i32_63 = arith.constant 0 : i32
          %67 = tpu.memref_slice %arg9[%c0_i32_60, %c0_i32_61, %c0_i32_63] : memref<2x8x128xf32, #tpu.memory_space<vmem>> -> memref<1x1x128xf32, #tpu.memory_space<vmem>>
          %68 = tpu.memref_squeeze %67 : memref<1x1x128xf32, #tpu.memory_space<vmem>> -> memref<128xf32, #tpu.memory_space<vmem>>
          %c0_i32_64 = arith.constant 0 : i32
          %69 = tpu.memref_slice %arg7[%c0_i32_62, %c0_i32_64] : memref<64x128xf32, #tpu.memory_space<any>> -> memref<1x128xf32, #tpu.memory_space<any>>
          %70 = tpu.memref_squeeze %69 : memref<1x128xf32, #tpu.memory_space<any>> -> memref<128xf32, #tpu.memory_space<any>>
          %71 = tpu.memref_slice %arg12[%53] : memref<2x!tpu.dma_semaphore, #tpu.memory_space<semaphore_mem>> -> memref<1x!tpu.dma_semaphore, #tpu.memory_space<semaphore_mem>>
          %72 = tpu.memref_squeeze %71 : memref<1x!tpu.dma_semaphore, #tpu.memory_space<semaphore_mem>> -> memref<!tpu.dma_semaphore, #tpu.memory_space<semaphore_mem>>
          tpu.wait_dma2 semaphore(%72 : memref<!tpu.dma_semaphore, #tpu.memory_space<semaphore_mem>>) src(%68 : memref<128xf32, #tpu.memory_space<vmem>>) dst(%70 : memref<128xf32, #tpu.memory_space<any>>)
          %c0_i32_65 = arith.constant 0 : i32
          %c0_i32_66 = arith.constant 0 : i32
          %c0_i32_67 = arith.constant 0 : i32
          %c0_i32_68 = arith.constant 0 : i32
          %73 = tpu.memref_slice %arg10[%c0_i32_65, %c0_i32_66, %c0_i32_68] : memref<2x8x128xf32, #tpu.memory_space<vmem>> -> memref<1x1x128xf32, #tpu.memory_space<vmem>>
          %74 = tpu.memref_squeeze %73 : memref<1x1x128xf32, #tpu.memory_space<vmem>> -> memref<128xf32, #tpu.memory_space<vmem>>
          %c0_i32_69 = arith.constant 0 : i32
          %75 = tpu.memref_slice %arg8[%c0_i32_67, %c0_i32_69] : memref<64x128xf32, #tpu.memory_space<any>> -> memref<1x128xf32, #tpu.memory_space<any>>
          %76 = tpu.memref_squeeze %75 : memref<1x128xf32, #tpu.memory_space<any>> -> memref<128xf32, #tpu.memory_space<any>>
          %77 = tpu.memref_slice %arg12[%53] : memref<2x!tpu.dma_semaphore, #tpu.memory_space<semaphore_mem>> -> memref<1x!tpu.dma_semaphore, #tpu.memory_space<semaphore_mem>>
          %78 = tpu.memref_squeeze %77 : memref<1x!tpu.dma_semaphore, #tpu.memory_space<semaphore_mem>> -> memref<!tpu.dma_semaphore, #tpu.memory_space<semaphore_mem>>
          tpu.wait_dma2 semaphore(%78 : memref<!tpu.dma_semaphore, #tpu.memory_space<semaphore_mem>>) src(%74 : memref<128xf32, #tpu.memory_space<vmem>>) dst(%76 : memref<128xf32, #tpu.memory_space<any>>)
        }
      } else {
      }
    } else {
    }
    return
  }
  func.func @transform_0(%arg0: i32, %arg1: memref<24xi32, #tpu.memory_space<smem>>, %arg2: memref<1xi32, #tpu.memory_space<smem>>) -> i32 {
    %c0_i32 = arith.constant 0 : i32
    %c0_i32_0 = arith.constant 0 : i32
    return %c0_i32 : i32
  }
  func.func @transform_1(%arg0: i32, %arg1: memref<24xi32, #tpu.memory_space<smem>>, %arg2: memref<1xi32, #tpu.memory_space<smem>>) -> (i32, i32) {
    %c0_i32 = arith.constant 0 : i32
    %c0_i32_0 = arith.constant 0 : i32
    return %arg0, %c0_i32 : i32, i32
  }
}

</mosaic_0001>

<llo_original>
// kernel: tpu_custom_call.1
$region0: #{tpu_custom_call.1}
  #allocation0 [shape = 'u32[]', space=smem, size = 0x4, offset = 0x4, fixed_abs, tag = 'smem constant byte address 0x4 - core index']
  #allocation1 [shape = 'u32[72,128]{1,0:T(1,128)}', space=vmem, size = 0x9000, scoped, tag = 'internal scratch']
  #allocation2 [shape = 'f32[2,8,128]{2,1,0:T(8,128)}', space=vmem, size = 0x2000, scoped, tag = 'scratch operand']
  #allocation3 [shape = 'f32[2,8,128]{2,1,0:T(8,128)}', space=vmem, size = 0x2000, scoped, tag = 'scratch operand']
  #allocation4 [shape = 's32[1]{0}', space=sflag, size = 0x4, scoped, tag = 'scratch operand']
  #allocation5 [shape = 's32[2]{0}', space=sflag, size = 0x8, scoped, tag = 'scratch operand']
  #allocation6 [shape = 's32[1]{0}', space=sflag, size = 0x4, scoped, tag = 'scoped memory for tpu_custom_call.1']
  #allocation7 [shape = 'u8[512]{0}', space=smem, size = 0x200, scoped, tag = 'prefetched SMEM operand 0']
  #allocation8 [shape = 's32[1]{0:T(128)S(6)}', space=smem, size = 0x200, scoped, tag = 'prefetched SMEM operand 1']
  #allocation9 [shape = 'f32[1]{0:T(128)S(6)}', space=smem, size = 0x200, scoped, tag = 'scoped memory for tpu_custom_call.1']
  #allocation10 [shape = 's32[]', space=sflag, size = 0x4, offset = 0, fixed_abs, tag = 'sflag constant byte address 0x0 - dummy sync flag']
  #allocation11 [shape = 's32[]', space=sflag, size = 0x4, offset = 0, fixed_abs, tag = 'sflag constant byte address 0x0 - dummy sync flag']
  #allocation12 [shape = 'u32[]', space=smem, size = 0x4, offset = 0x44, fixed_abs, tag = 'smem constant byte address 0x44 - assertion arg 0']
  #allocation13 [shape = 'u32[]', space=smem, size = 0x4, offset = 0x48, fixed_abs, tag = 'smem constant byte address 0x48 - assertion arg 1']
  #allocation14 [shape = 's32[]', space=sflag, size = 0x4, offset = 0, fixed_abs, tag = 'sflag constant byte address 0x0 - dummy sync flag']
  #allocation15 [shape = 's32[]', space=sflag, size = 0x4, offset = 0, fixed_abs, tag = 'sflag constant byte address 0x0 - dummy sync flag']
  #allocation16 [shape = 's32[]', space=sflag, size = 0x4, offset = 0, fixed_abs, tag = 'sflag constant byte address 0x0 - dummy sync flag']
  #allocation17 [shape = 's32[]', space=sflag, size = 0x4, offset = 0, fixed_abs, tag = 'sflag constant byte address 0x0 - dummy sync flag']
  #allocation18 [shape = 's32[]', space=sflag, size = 0x4, offset = 0, fixed_abs, tag = 'sflag constant byte address 0x0 - dummy sync flag']
  #allocation19 [shape = 's32[]', space=sflag, size = 0x4, offset = 0, fixed_abs, tag = 'sflag constant byte address 0x0 - dummy sync flag']
  %s0 = inlined_call_operand.vmem [shape: s32[24], index: 0, kind: input, shape index: {}]
  %s1 = inlined_call_operand.<no memory space> [shape: s32[1], index: 1, kind: input, shape index: {}]
  %s2 = inlined_call_operand.<no memory space> [shape: f32[1], index: 2, kind: input, shape index: {}]
  %s3 = inlined_call_operand.vmem [shape: f32[24,128], index: 3, kind: input, shape index: {}]
  %s4 = inlined_call_operand.hbm [shape: f32[64,128], index: 4, kind: input, shape index: {}, may-alias: {4,6}]
  %s5 = inlined_call_operand.hbm [shape: f32[64,128], index: 5, kind: input, shape index: {}, may-alias: {5,7}]
  %s6 = inlined_call_operand.hbm [shape: f32[64,128], index: 6, kind: output, shape index: {0}, may-alias: {4,6}]
  %s7 = inlined_call_operand.hbm [shape: f32[64,128], index: 7, kind: output, shape index: {1}, may-alias: {5,7}]
  %8 = xla_tuple %s6, %s7
  %s9 = sld [smem:[#allocation0]]
  $region103: #{tpu_custom_call.1} parent=0
    _
  %s11 = ssub.s32 1, %s9
  %s12 = scalar_select 0, %s11, %s9
  %s14 = sshll.u32 %s0, 4
  %s15 = int_to_ptr.vmem [resolvable:$true] %s14
  %17 = dma.vmem_to_smem %s15, 16, [#allocation7], [#allocation6]
  %18 = sst [smem:[#allocation8]] %s1
  %19 = sst [smem:[#allocation9]] %s2
  %21 = dma.done [#allocation6], 16
  %22 = sfence
  loop: start=0, step=1, limit=4
  $region2: #{tpu_custom_call.1} parent=0 // loop_pre_header
    _
  $region3: #{tpu_custom_call.1} parent=0 // loop_header
    %s24 = sphi 0, %s28
    %p25 = scmp.ge.s32.totalorder %s24, 4
    %s31 = sphi 0, %s31
    %s33 = sphi 0, %s31
    %s41 = sphi 0, %s33
    %s47 = sphi 0, %s49
    %s50 = sphi 0, %s47
    %s60 = sphi 0, %s50
  $region4: #{tpu_custom_call.1} parent=0 // loop_header_branch
    %27 = sbr.rel (%p25) target = $region8
  $region5: #{tpu_custom_call.1} parent=0 // loop_body
    %s29 = ssub.s32 %s24, 1
    %s30 = sadd.s32 %s24, 1
    %s32 = sadd.s32 %s31, 1
    %p34 = scmp.eq.s32.totalorder %s24, 2
    %p35 = scmp.ne.s32.totalorder %s31, %s33
    %p36 = scmp.eq.s32.totalorder %s24, 0
    %p37 = por %p35, %p36
    %p38 = scmp.ne.s32.totalorder %s31, %s33
    %p39 = scmp.eq.s32.totalorder %s29, 2
    %p40 = por %p38, %p39
    %p42 = scmp.ne.s32.totalorder %s33, %s41
    %p43 = scmp.eq.s32.totalorder %s29, 0
    %p44 = por %p42, %p43
    %s45 = ssub.s32 %s24, %s30
    %p46 = scmp.eq.s32.totalorder %s45, 0
    %s48 = sadd.s32 %s47, 1
    %s49 = scalar_select %p46, %s47, %s48
    %p51 = pneg %p46
    %p52 = scmp.eq.s32.totalorder %s24, 2
    %p53 = por %p51, %p52
    %p54 = scmp.ne.s32.totalorder %s47, %s50
    %p55 = scmp.eq.s32.totalorder %s24, 0
    %p56 = por %p54, %p55
    %p57 = scmp.ne.s32.totalorder %s47, %s50
    %p58 = scmp.eq.s32.totalorder %s29, 2
    %p59 = por %p57, %p58
    %p61 = scmp.ne.s32.totalorder %s50, %s60
    %p62 = scmp.eq.s32.totalorder %s29, 0
    %p63 = por %p61, %p62
    %p64 = scmp.le.s32.totalorder 1, %s24
    // Predicated region
    $region9: #{tpu_custom_call.1} parent=5 // pred_check
      %p65 = pneg %p64
    $region10: #{tpu_custom_call.1} parent=5 // pred_check_branch
      %67 = sbr.rel (%p65) target = $region12
    $region11: #{tpu_custom_call.1} parent=5 // pred_region
      %s68 = ssub.s32 %s24, 1
      // Predicated region
      $region13: #{tpu_custom_call.1} parent=11 // pred_check
        %p69 = pneg %p44
      $region14: #{tpu_custom_call.1} parent=11 // pred_check_branch
        %71 = sbr.rel (%p69) target = $region16
      $region15: #{tpu_custom_call.1} parent=11 // pred_region
        _
      $region16: #{tpu_custom_call.1} parent=11 // pred_fallthru
        _
    $region12: #{tpu_custom_call.1} parent=5 // pred_fallthru
      _
    %p72 = scmp.lt.s32.totalorder %s24, 3
    // Predicated region
    $region17: #{tpu_custom_call.1} parent=5 // pred_check
      %p73 = pneg %p72
    $region18: #{tpu_custom_call.1} parent=5 // pred_check_branch
      %75 = sbr.rel (%p73) target = $region20
    $region19: #{tpu_custom_call.1} parent=5 // pred_region
      // Predicated region
      $region21: #{tpu_custom_call.1} parent=19 // pred_check
        %p76 = pneg %p56
      $region22: #{tpu_custom_call.1} parent=19 // pred_check_branch
        %78 = sbr.rel (%p76) target = $region24
      $region23: #{tpu_custom_call.1} parent=19 // pred_region
        %p79 = scmp.lt.s32.totalorder %s24, 2
        %s80 = scalar_select %p79, %s24, 2
        %s81 = smul.addr %s80, 8
        %s82 = scalar_lea.vmem %s3, %s81
      $region24: #{tpu_custom_call.1} parent=19 // pred_fallthru
        _
    $region20: #{tpu_custom_call.1} parent=5 // pred_fallthru
      _
    %p83 = scmp.le.s32.totalorder 1, %s24
    // Predicated region
    $region25: #{tpu_custom_call.1} parent=5 // pred_check
      %p84 = pneg %p83
    $region26: #{tpu_custom_call.1} parent=5 // pred_check_branch
      %86 = sbr.rel (%p84) target = $region28
    $region27: #{tpu_custom_call.1} parent=5 // pred_region
      %s87 = ssub.s32 %s24, 1
      %p88 = pneg %p44
      %p89 = pneg %p40
      %p90 = scmp.lt.s32.totalorder %s29, 2
      %s91 = scalar_select %p90, %s29, 2
      %s92 = smul.addr %s91, 8
      %s93 = scalar_lea.vmem %s3, %s92
      %p94 = pneg %p63
      %p95 = pneg %p59
      %p96 = scmp.lt.s32.totalorder %s29, 2
      %s97 = scalar_select %p96, %s29, 2
      %s98 = smul.addr %s97, 8
      %s99 = scalar_lea.vmem %s3, %s98
      %s100 = sld [smem:[#allocation8]]
      %s101 = sld [smem:[#allocation9]]
      %s102 = smul.u32 %s29, 8
      %p103 = scmp.lt.s32.totalorder %s29, 0
      %s104 = ssub.s32 0, %s29
      %s105 = scalar_select %p103, %s104, %s29
      %s106 = sand.u32 %s105, 1
      %s107 = ssub.s32 0, %s106
      %s108 = scalar_select %p103, %s107, %s106
      %p109 = scmp.ne.s32.totalorder %s108, 0
      %p110 = scmp.lt.s32.totalorder %s108, 0
      %p111 = pnand %p110, %p109
      %p112 = pneg %p111
      %s113 = sadd.s32 %s108, 2
      %s114 = scalar_select %p112, %s113, %s108
      %s115 = ssub.s32 %s100, %s102
      %p116 = scmp.gt.s32.totalorder %s115, 0
      %s117 = scalar_select %p116, %s115, 0
      %p118 = scmp.lt.s32.totalorder %s117, 8
      %s119 = scalar_select %p118, %s117, 8
      %p120 = scmp.ge.s32.totalorder %s29, 2
      // Predicated region
      $region29: #{tpu_custom_call.1} parent=27 // pred_check
        %p121 = pneg %p120
      $region30: #{tpu_custom_call.1} parent=27 // pred_check_branch
        %123 = sbr.rel (%p121) target = $region32
      $region31: #{tpu_custom_call.1} parent=27 // pred_region
        %s124 = ssub.s32 %s29, 2
        %s125 = smul.u32 %s124, 8
        %s126 = ssub.s32 %s100, %s125
        %p127 = scmp.gt.s32.totalorder %s126, 0
        %s128 = scalar_select %p127, %s126, 0
        %p129 = scmp.lt.s32.totalorder %s128, 8
        %s130 = scalar_select %p129, %s128, 8
        // While loop
        $region33: #{tpu_custom_call.1} parent=31 // loop_pre_header
          _
        $region34: #{tpu_custom_call.1} parent=31 // loop_header
          %s132 = sphi 0, %s134
          %p133 = scmp.ge.s32.totalorder %s132, %s130
        $region35: #{tpu_custom_call.1} parent=31 // loop_header_branch
          %136 = sbr.rel (%p133) target = $region39
        $region36: #{tpu_custom_call.1} parent=31 // loop_body
          %s137 = scalar_lea.sflag [#allocation5], %s114
          %139 = dma.done %s137, 16
          %141 = dma.done %s137, 16
        $region37: #{tpu_custom_call.1} parent=31 // loop_footer
          %s134 = sadd.s32 %s132, 1
        $region38: #{tpu_custom_call.1} parent=31 // loop_footer_branch
          %131 = sbr.rel target = $region34
        $region39: #{tpu_custom_call.1} parent=31 // loop_exit
          _
      $region32: #{tpu_custom_call.1} parent=27 // pred_fallthru
        _
      // While loop
      $region40: #{tpu_custom_call.1} parent=27 // loop_pre_header
        _
      $region41: #{tpu_custom_call.1} parent=27 // loop_header
        %s143 = sphi 0, %s145
        %p144 = scmp.ge.s32.totalorder %s143, %s119
      $region42: #{tpu_custom_call.1} parent=27 // loop_header_branch
        %147 = sbr.rel (%p144) target = $region46
      $region43: #{tpu_custom_call.1} parent=27 // loop_body
        %s148 = sadd.s32 %s102, %s143
        %s149 = sld [smem:[#allocation7 + %s148]]
        %s150 = scalar_lea.hbm %s4, %s149
        %s151 = smul.u32 %s114, 8
        %s152 = sadd.s32 %s143, %s151
        %s153 = scalar_lea.vmem [#allocation2], %s152
        // Predicated region
        $region47: #{tpu_custom_call.1} parent=43 // pred_check
          _
        $region48: #{tpu_custom_call.1} parent=43 // pred_check_branch
          %155 = sbr.rel target = $region50
        $region49: #{tpu_custom_call.1} parent=43 // pred_region
          %156 = sst [smem:[#allocation12]] [#allocation11]
          %157 = sst [smem:[#allocation13]] [#allocation10]
        $region50: #{tpu_custom_call.1} parent=43 // pred_fallthru
          _
        %159 = shalt.err (0)
        %s161 = sshll.u32 %s150, 4
        %s162 = int_to_ptr.hbm [resolvable:$true] %s161
        %s163 = sshll.u32 %s153, 4
        %s164 = int_to_ptr.vmem [resolvable:$true] %s163
        %166 = dma.hbm_to_vmem [thread:$0]  %s162, 16, %s164, [#allocation4]
        %s167 = scalar_lea.hbm %s5, %s149
        %s168 = scalar_lea.vmem [#allocation3], %s152
        // Predicated region
        $region51: #{tpu_custom_call.1} parent=43 // pred_check
          _
        $region52: #{tpu_custom_call.1} parent=43 // pred_check_branch
          %170 = sbr.rel target = $region54
        $region53: #{tpu_custom_call.1} parent=43 // pred_region
          %171 = sst [smem:[#allocation12]] [#allocation15]
          %172 = sst [smem:[#allocation13]] [#allocation14]
        $region54: #{tpu_custom_call.1} parent=43 // pred_fallthru
          _
        %174 = shalt.err (0)
        %s176 = sshll.u32 %s167, 4
        %s177 = int_to_ptr.hbm [resolvable:$true] %s176
        %s178 = sshll.u32 %s168, 4
        %s179 = int_to_ptr.vmem [resolvable:$true] %s178
        %181 = dma.hbm_to_vmem [thread:$0]  %s177, 16, %s179, [#allocation4]
      $region44: #{tpu_custom_call.1} parent=27 // loop_footer
        %s145 = sadd.s32 %s143, 1
      $region45: #{tpu_custom_call.1} parent=27 // loop_footer_branch
        %142 = sbr.rel target = $region41
      $region46: #{tpu_custom_call.1} parent=27 // loop_exit
        _
      // While loop
      $region55: #{tpu_custom_call.1} parent=27 // loop_pre_header
        _
      $region56: #{tpu_custom_call.1} parent=27 // loop_header
        %s183 = sphi 0, %s185
        %p184 = scmp.ge.s32.totalorder %s183, %s119
      $region57: #{tpu_custom_call.1} parent=27 // loop_header_branch
        %187 = sbr.rel (%p184) target = $region61
      $region58: #{tpu_custom_call.1} parent=27 // loop_body
        %189 = dma.done [#allocation4], 16
        %191 = dma.done [#allocation4], 16
      $region59: #{tpu_custom_call.1} parent=27 // loop_footer
        %s185 = sadd.s32 %s183, 1
      $region60: #{tpu_custom_call.1} parent=27 // loop_footer_branch
        %182 = sbr.rel target = $region56
      $region61: #{tpu_custom_call.1} parent=27 // loop_exit
        _
      %p192 = scmp.gt.s32.totalorder %s119, 0
      // Predicated region
      $region62: #{tpu_custom_call.1} parent=27 // pred_check
        %p193 = pneg %p192
      $region63: #{tpu_custom_call.1} parent=27 // pred_check_branch
        %195 = sbr.rel (%p193) target = $region65
      $region64: #{tpu_custom_call.1} parent=27 // pred_region
        %v196 = vld [vmem:[%s99] sm:$0xff]
        %s197 = smul.u32 %s114, 8
        %s198 = scalar_lea.vmem [#allocation2], %s197
        %v199 = vld [vmem:[%s198] sm:$0xff]
        %s200 = scalar_lea.vmem [#allocation3], %s197
        %v201 = vld [vmem:[%s200] sm:$0xff]
        %v202 = vmul.f32 %v196, %v196
        %v203 = vadd.f32 %v201, %v202
        %v204 = vstv %s101
        %v205 = vmul.f32 %v204, %v196
        %v206 = vadd.f32 %v203, 1e-10
        %v207 = vrsqrt.pop %v206
        %v208 = vmul.f32 %v207, %v206
        %v209 = vmul.f32 %v208, %v207
        %v210 = vmul.f32 0.5, %v209
        %v211 = vsub.f32 1.5, %v210
        %v212 = vmul.f32 %v207, %v211
        %vm213 = vweird.f32 %v206
        %vm214 = vweird.f32 %v207
        %vm215 = vmor %vm213, %vm214
        %v216 = vsel %vm215, %v207, %v212
        %v217 = vmul.f32 %v205, %v216
        %v218 = vsub.f32 %v199, %v217
        %219 = vst [vmem:[%s198] sm:$0xff] %v218
        %220 = vst [vmem:[%s200] sm:$0xff] %v203
      $region65: #{tpu_custom_call.1} parent=27 // pred_fallthru
        _
      // While loop
      $region66: #{tpu_custom_call.1} parent=27 // loop_pre_header
        _
      $region67: #{tpu_custom_call.1} parent=27 // loop_header
        %s222 = sphi 0, %s224
        %p223 = scmp.ge.s32.totalorder %s222, %s119
      $region68: #{tpu_custom_call.1} parent=27 // loop_header_branch
        %226 = sbr.rel (%p223) target = $region72
      $region69: #{tpu_custom_call.1} parent=27 // loop_body
        %s227 = sadd.s32 %s102, %s222
        %s228 = sld [smem:[#allocation7 + %s227]]
        %s229 = smul.u32 %s114, 8
        %s230 = sadd.s32 %s222, %s229
        %s231 = scalar_lea.vmem [#allocation2], %s230
        %s232 = scalar_lea.hbm %s6, %s228
        %s233 = scalar_lea.sflag [#allocation5], %s114
        // Predicated region
        $region73: #{tpu_custom_call.1} parent=69 // pred_check
          _
        $region74: #{tpu_custom_call.1} parent=69 // pred_check_branch
          %235 = sbr.rel target = $region76
        $region75: #{tpu_custom_call.1} parent=69 // pred_region
          %236 = sst [smem:[#allocation12]] [#allocation17]
          %237 = sst [smem:[#allocation13]] [#allocation16]
        $region76: #{tpu_custom_call.1} parent=69 // pred_fallthru
          _
        %239 = shalt.err (0)
        %s241 = sshll.u32 %s231, 4
        %s242 = int_to_ptr.vmem [resolvable:$true] %s241
        %s243 = sshll.u32 %s232, 4
        %s244 = int_to_ptr.hbm [resolvable:$true] %s243
        %246 = dma.vmem_to_hbm [thread:$0]  %s242, 16, %s244, %s233
        %s247 = scalar_lea.vmem [#allocation3], %s230
        %s248 = scalar_lea.hbm %s7, %s228
        // Predicated region
        $region77: #{tpu_custom_call.1} parent=69 // pred_check
          _
        $region78: #{tpu_custom_call.1} parent=69 // pred_check_branch
          %250 = sbr.rel target = $region80
        $region79: #{tpu_custom_call.1} parent=69 // pred_region
          %251 = sst [smem:[#allocation12]] [#allocation19]
          %252 = sst [smem:[#allocation13]] [#allocation18]
        $region80: #{tpu_custom_call.1} parent=69 // pred_fallthru
          _
        %254 = shalt.err (0)
        %s256 = sshll.u32 %s247, 4
        %s257 = int_to_ptr.vmem [resolvable:$true] %s256
        %s258 = sshll.u32 %s248, 4
        %s259 = int_to_ptr.hbm [resolvable:$true] %s258
        %261 = dma.vmem_to_hbm [thread:$0]  %s257, 16, %s259, %s233
      $region70: #{tpu_custom_call.1} parent=27 // loop_footer
        %s224 = sadd.s32 %s222, 1
      $region71: #{tpu_custom_call.1} parent=27 // loop_footer_branch
        %221 = sbr.rel target = $region67
      $region72: #{tpu_custom_call.1} parent=27 // loop_exit
        _
      %p262 = scmp.eq.s32.totalorder %s29, 2
      // Predicated region
      $region81: #{tpu_custom_call.1} parent=27 // pred_check
        %p263 = pneg %p262
      $region82: #{tpu_custom_call.1} parent=27 // pred_check_branch
        %265 = sbr.rel (%p263) target = $region84
      $region83: #{tpu_custom_call.1} parent=27 // pred_region
        // While loop
        $region85: #{tpu_custom_call.1} parent=83 // loop_pre_header
          _
        $region86: #{tpu_custom_call.1} parent=83 // loop_header
          %s267 = sphi 0, %s269
          %p268 = scmp.ge.s32.totalorder %s267, %s119
        $region87: #{tpu_custom_call.1} parent=83 // loop_header_branch
          %271 = sbr.rel (%p268) target = $region91
        $region88: #{tpu_custom_call.1} parent=83 // loop_body
          %s272 = scalar_lea.sflag [#allocation5], %s114
          %274 = dma.done %s272, 16
          %276 = dma.done %s272, 16
        $region89: #{tpu_custom_call.1} parent=83 // loop_footer
          %s269 = sadd.s32 %s267, 1
        $region90: #{tpu_custom_call.1} parent=83 // loop_footer_branch
          %266 = sbr.rel target = $region86
        $region91: #{tpu_custom_call.1} parent=83 // loop_exit
          _
        %p277 = scmp.ge.s32.totalorder %s29, 1
        // Predicated region
        $region92: #{tpu_custom_call.1} parent=83 // pred_check
          %p278 = pneg %p277
        $region93: #{tpu_custom_call.1} parent=83 // pred_check_branch
          %280 = sbr.rel (%p278) target = $region95
        $region94: #{tpu_custom_call.1} parent=83 // pred_region
          %s281 = ssub.s32 1, %s114
          %s282 = ssub.s32 %s29, 1
          %s283 = smul.u32 %s282, 8
          %s284 = ssub.s32 %s100, %s283
          %p285 = scmp.gt.s32.totalorder %s284, 0
          %s286 = scalar_select %p285, %s284, 0
          %p287 = scmp.lt.s32.totalorder %s286, 8
          %s288 = scalar_select %p287, %s286, 8
          // While loop
          $region96: #{tpu_custom_call.1} parent=94 // loop_pre_header
            _
          $region97: #{tpu_custom_call.1} parent=94 // loop_header
            %s290 = sphi 0, %s292
            %p291 = scmp.ge.s32.totalorder %s290, %s288
          $region98: #{tpu_custom_call.1} parent=94 // loop_header_branch
            %294 = sbr.rel (%p291) target = $region102
          $region99: #{tpu_custom_call.1} parent=94 // loop_body
            %s295 = scalar_lea.sflag [#allocation5], %s281
            %297 = dma.done %s295, 16
            %299 = dma.done %s295, 16
          $region100: #{tpu_custom_call.1} parent=94 // loop_footer
            %s292 = sadd.s32 %s290, 1
          $region101: #{tpu_custom_call.1} parent=94 // loop_footer_branch
            %289 = sbr.rel target = $region97
          $region102: #{tpu_custom_call.1} parent=94 // loop_exit
            _
        $region95: #{tpu_custom_call.1} parent=83 // pred_fallthru
          _
      $region84: #{tpu_custom_call.1} parent=27 // pred_fallthru
        _
    $region28: #{tpu_custom_call.1} parent=5 // pred_fallthru
      _
  $region6: #{tpu_custom_call.1} parent=0 // loop_footer
    %s28 = sadd.s32 1, %s24
  $region7: #{tpu_custom_call.1} parent=0 // loop_footer_branch
    %23 = sbr.rel target = $region3
  $region8: #{tpu_custom_call.1} parent=0 // loop_exit
    _
  %300 = vsyncmov [#allocation4]
  %s301 = vpop.sfrf %300
  %p302 = scmp.eq.s32.totalorder %s301, 0
  %p303 = pneg %p302
  %305 = shalt.err (%p303)
  %306 = vsyncmov [#allocation5]
  %s307 = vpop.sfrf %306
  %p308 = scmp.eq.s32.totalorder %s307, 0
  %p309 = pneg %p308
  %311 = shalt.err (%p309)
  %s312 = scalar_lea.sflag [#allocation5], 1
  %313 = vsyncmov %s312
  %s314 = vpop.sfrf %313
  %p315 = scmp.eq.s32.totalorder %s314, 0
  %p316 = pneg %p315
  %318 = shalt.err (%p316)

</llo_original>
